<compile_context>
chip_gen: v6e
topology: v6e:2x2x1
jax: 0.10.0
libtpu: 0.0.40
codegen_flags: <defaults>
</compile_context>

<pallas_src>
import jax
import jax.numpy as jnp
from jax import lax
from jax.experimental import pallas as pl
from jax.experimental.pallas import tpu as pltpu


def _pick_tile(n, tile=128):
    """Use a 128-wide tile when it divides n, else fall back to the full extent."""
    return tile if (n >= tile and n % tile == 0) else n


# ---------------------------------------------------------------------------
# Kernel 1: fused Q/K/V 1x1-conv projections (single weight-stationary matmul)
# ---------------------------------------------------------------------------
def _qkv_proj_kernel(x_ref, w_ref, b_ref, q_ref, k_ref, v_ref):
    # x_ref: (tn, C) f32   w_ref: (C, 2*C8 + C) bf16   b_ref: (1, 2*C8 + C) f32
    x = x_ref[...].astype(jnp.bfloat16)
    qkv = jnp.dot(x, w_ref[...], preferred_element_type=jnp.float32)
    qkv = qkv + b_ref[...]                                   # (tn, 2*C8 + C)
    c8 = q_ref.shape[-1]
    q_ref[...] = qkv[:, :c8].astype(q_ref.dtype)
    k_ref[...] = qkv[:, c8:2 * c8].astype(k_ref.dtype)
    v_ref[...] = qkv[:, 2 * c8:].astype(v_ref.dtype)


def qkv_projection(x_bnc, w_packed, b_packed, c8):
    B, N, C = x_bnc.shape
    d_all = w_packed.shape[1]
    tn = _pick_tile(N)
    return pl.pallas_call(
        _qkv_proj_kernel,
        out_shape=(
            jax.ShapeDtypeStruct((B, N, c8), jnp.bfloat16),
            jax.ShapeDtypeStruct((B, N, c8), jnp.bfloat16),
            jax.ShapeDtypeStruct((B, N, C), jnp.bfloat16),
        ),
        grid_spec=pltpu.PrefetchScalarGridSpec(
            num_scalar_prefetch=0,
            grid=(B, N // tn),
            in_specs=[
                pl.BlockSpec((None, tn, C), lambda b, i: (b, i, 0)),   # x tile
                pl.BlockSpec((C, d_all), lambda b, i: (0, 0)),         # packed W
                pl.BlockSpec((1, d_all), lambda b, i: (0, 0)),         # packed bias
            ],
            out_specs=(
                pl.BlockSpec((None, tn, c8), lambda b, i: (b, i, 0)),  # q
                pl.BlockSpec((None, tn, c8), lambda b, i: (b, i, 0)),  # k
                pl.BlockSpec((None, tn, C), lambda b, i: (b, i, 0)),   # v
            ),
        ),
        compiler_params=pltpu.CompilerParams(
            dimension_semantics=("parallel", "parallel")),
    )(x_bnc, w_packed, b_packed)


# ---------------------------------------------------------------------------
# Kernel 2: flash-style self-attention + gamma-scaled residual
# ---------------------------------------------------------------------------
def _flash_attn_kernel(q_ref, k_ref, v_ref, x_ref, gamma_ref, o_ref,
                       m_sc, l_sc, acc_sc):
    ki = pl.program_id(2)

    @pl.when(ki == 0)
    def _():
        m_sc[...] = jnp.full_like(m_sc, -jnp.inf)
        l_sc[...] = jnp.zeros_like(l_sc)
        acc_sc[...] = jnp.zeros_like(acc_sc)

    q = q_ref[...]                                   # (tq, C8) bf16
    k = k_ref[...]                                   # (tk, C8) bf16
    # S = q @ k^T (standard flash QK^T contraction over the small C8 axis)
    s = lax.dot_general(q, k, (((1,), (1,)), ((), ())),
                        preferred_element_type=jnp.float32)   # (tq, tk) f32

    m_prev = m_sc[...]
    m_new = jnp.maximum(m_prev, jnp.max(s, axis=-1, keepdims=True))
    alpha = jnp.exp(m_prev - m_new)                  # f32 on VPU/EUP
    p = jnp.exp(s - m_new)                           # (tq, tk) f32
    l_sc[...] = alpha * l_sc[...] + jnp.sum(p, axis=-1, keepdims=True)
    acc_sc[...] = alpha * acc_sc[...] + jnp.dot(
        p.astype(jnp.bfloat16), v_ref[...], preferred_element_type=jnp.float32)
    m_sc[...] = m_new

    @pl.when(ki == pl.num_programs(2) - 1)
    def _():
        out = acc_sc[...] * pl.reciprocal(l_sc[...], approx=True)
        o_ref[...] = (gamma_ref[0] * out + x_ref[...]).astype(o_ref.dtype)


def flash_self_attention(q, k, v, x_bnc, gamma):
    B, N, C = x_bnc.shape
    c8 = q.shape[-1]
    tq = _pick_tile(N)
    tk = _pick_tile(N)

    # Rough per-step VMEM budget: double-buffered blocks + scratch, 2x headroom,
    # clamped to [32 MiB, 48 MiB] so it stays safe under v7x's 64 MiB VMEM.
    blocks = 2 * (tq * c8 * 2 + tk * c8 * 2 + tk * C * 2 + tq * C * 4 + tq * C * 4)
    scratch = tq * C * 4 + 2 * tq * 128 * 4
    vmem_limit = min(48 * 1024 * 1024,
                     max(32 * 1024 * 1024, 2 * (blocks + scratch)))

    return pl.pallas_call(
        _flash_attn_kernel,
        out_shape=jax.ShapeDtypeStruct((B, N, C), jnp.float32),
        grid_spec=pltpu.PrefetchScalarGridSpec(
            num_scalar_prefetch=0,
            grid=(B, N // tq, N // tk),
            in_specs=[
                pl.BlockSpec((None, tq, c8), lambda b, qi, ki: (b, qi, 0)),  # q
                pl.BlockSpec((None, tk, c8), lambda b, qi, ki: (b, ki, 0)),  # k
                pl.BlockSpec((None, tk, C), lambda b, qi, ki: (b, ki, 0)),   # v
                pl.BlockSpec((None, tq, C), lambda b, qi, ki: (b, qi, 0)),   # x (residual)
                pl.BlockSpec(memory_space=pltpu.MemorySpace.SMEM),           # gamma
            ],
            out_specs=pl.BlockSpec((None, tq, C), lambda b, qi, ki: (b, qi, 0)),
            scratch_shapes=[
                pltpu.VMEM((tq, 1), jnp.float32),   # running max  m
                pltpu.VMEM((tq, 1), jnp.float32),   # running sum  l
                pltpu.VMEM((tq, C), jnp.float32),   # accumulator
            ],
        ),
        compiler_params=pltpu.CompilerParams(
            dimension_semantics=("parallel", "parallel", "arbitrary"),
            vmem_limit_bytes=vmem_limit),
    )(q, k, v, x_bnc, gamma)


# ---------------------------------------------------------------------------
# Module-level wrapper (NCHW in / NCHW out, matching the PyTorch forward)
# ---------------------------------------------------------------------------
def self_attn_forward(x_nchw, params):
    B, C, W, H = x_nchw.shape
    N = W * H
    # channels-last flattened layout (layout plumbing done once in the wrapper)
    x_bnc = x_nchw.reshape(B, C, N).transpose(0, 2, 1)        # (B, N, C)

    # pack Wq / Wk / Wv into one (C, 2*C8 + C) bf16 weight + (1, 2*C8 + C) bias
    w_packed = jnp.concatenate(
        [params["wq"], params["wk"], params["wv"]], axis=0).T.astype(jnp.bfloat16)
    b_packed = jnp.concatenate(
        [params["bq"], params["bk"], params["bv"]], axis=0).reshape(1, -1)
    b_packed = b_packed.astype(jnp.float32)
    c8 = params["wq"].shape[0]

    q, k, v = qkv_projection(x_bnc, w_packed, b_packed, c8)
    y_bnc = flash_self_attention(q, k, v, x_bnc,
                                 params["gamma"].reshape(1).astype(jnp.float32))
    return y_bnc.transpose(0, 2, 1).reshape(B, C, W, H)


def self_attn_reference(x_nchw, params):
    """Pure-JAX f32 reference mirroring the PyTorch module."""
    B, C, W, H = x_nchw.shape
    N = W * H
    x = x_nchw.reshape(B, C, N)
    q = jnp.einsum("oc,bcn->bon", params["wq"], x) + params["bq"][None, :, :]
    k = jnp.einsum("oc,bcn->bon", params["wk"], x) + params["bk"][None, :, :]
    v = jnp.einsum("oc,bcn->bon", params["wv"], x) + params["bv"][None, :, :]
    energy = jnp.einsum("bci,bcj->bij", q, k)
    attn = jax.nn.softmax(energy, axis=-1)
    out = jnp.einsum("bcj,bij->bci", v, attn)
    y = params["gamma"].reshape(())[None, None, None] * out + x
    return y.reshape(B, C, W, H)


if __name__ == "__main__":
    # Small but tile-aligned shapes: C = 128 (lane-dense output tiles),
    # 16x16 feature map -> N = 256 so the online softmax spans 2 KV tiles.
    B, C, W, H = 2, 128, 16, 16
    C8 = C // 8

    key = jax.random.PRNGKey(0)
    kx, kwq, kbq, kwk, kbk, kwv, kbv = jax.random.split(key, 7)

    x = jax.random.normal(kx, (B, C, W, H), dtype=jnp.float32)

    # Conv2d(in, out, 1) weights are (out, in, 1, 1); squeeze to (out, in).
    scale = 0.05
    params = {
        "wq": scale * jax.random.normal(kwq, (C8, C), dtype=jnp.float32),
        "bq": scale * jax.random.normal(kbq, (C8, 1), dtype=jnp.float32),
        "wk": scale * jax.random.normal(kwk, (C8, C), dtype=jnp.float32),
        "bk": scale * jax.random.normal(kbk, (C8, 1), dtype=jnp.float32),
        "wv": scale * jax.random.normal(kwv, (C, C), dtype=jnp.float32),
        "bv": scale * jax.random.normal(kbv, (C, 1), dtype=jnp.float32),
        # Module inits gamma = 0 (output would equal x); use a nonzero value so
        # the attention path is actually exercised.
        "gamma": jnp.full((1,), 0.5, dtype=jnp.float32),
    }

    y = self_attn_forward(x, params)
    y = jax.block_until_ready(y)

    y_ref = self_attn_reference(x, params)
    assert y.shape == (B, C, W, H)
    # bf16 MXU operands -> modest tolerance vs the f32 reference.
    assert jnp.allclose(y, y_ref, atol=5e-2, rtol=5e-2), "mismatch vs reference"

    print("KERNEL_OK")
</pallas_src>

<mosaic_0001>
module attributes {stable_mosaic.version = 11 : i64} {
  func.func @_qkv_proj_kernel(%arg0: i32, %arg1: i32, %arg2: memref<1x128x128xf32, #tpu.memory_space<vmem>>, %arg3: memref<128x160xbf16, #tpu.memory_space<vmem>>, %arg4: memref<1x160xf32, #tpu.memory_space<vmem>>, %arg5: memref<1x128x16xbf16, #tpu.memory_space<vmem>>, %arg6: memref<1x128x16xbf16, #tpu.memory_space<vmem>>, %arg7: memref<1x128x128xbf16, #tpu.memory_space<vmem>>) attributes {dimension_semantics = [#tpu.dimension_semantics<parallel>, #tpu.dimension_semantics<parallel>], iteration_bounds = array<i64: 2, 2>, scalar_prefetch = 0 : i64, scratch_operands = 0 : i64, tpu.core_type = #tpu.core_type<tc>, window_params = [{transform_indices = @transform_0, window_bounds = array<i64: 1, 128, 128>}, {pipeline_mode = #tpu.pipeline_mode<synchronous>, transform_indices = @transform_1, window_bounds = array<i64: 128, 160>}, {pipeline_mode = #tpu.pipeline_mode<synchronous>, transform_indices = @transform_2, window_bounds = array<i64: 1, 160>}, {transform_indices = @transform_3, window_bounds = array<i64: 1, 128, 16>}, {transform_indices = @transform_4, window_bounds = array<i64: 1, 128, 16>}, {transform_indices = @transform_5, window_bounds = array<i64: 1, 128, 128>}]} {
    %c0 = arith.constant 0 : index
    %c0_0 = arith.constant 0 : index
    %c0_1 = arith.constant 0 : index
    %0 = vector.load %arg2[%c0, %c0_0, %c0_1] : memref<1x128x128xf32, #tpu.memory_space<vmem>>, vector<1x128x128xf32>
    %1 = vector.shape_cast %0 : vector<1x128x128xf32> to vector<128x128xf32>
    %2 = arith.truncf %1 : vector<128x128xf32> to vector<128x128xbf16>
    %c0_2 = arith.constant 0 : index
    %c0_3 = arith.constant 0 : index
    %3 = vector.load %arg3[%c0_2, %c0_3] : memref<128x160xbf16, #tpu.memory_space<vmem>>, vector<128x160xbf16>
    %cst = arith.constant dense<0.000000e+00> : vector<128x160xf32>
    %4 = tpu.matmul %2, %3, %cst {dimension_numbers = #tpu.dot_dimension_numbers<[1], [0], [0], [1], [0, 0, 1, 1], [], []>} : vector<128x128xbf16>, vector<128x160xbf16>, vector<128x160xf32> -> vector<128x160xf32>
    %c0_4 = arith.constant 0 : index
    %c0_5 = arith.constant 0 : index
    %5 = vector.load %arg4[%c0_4, %c0_5] : memref<1x160xf32, #tpu.memory_space<vmem>>, vector<1x160xf32>
    %6 = vector.broadcast %5 : vector<1x160xf32> to vector<128x160xf32>
    %7 = arith.addf %4, %6 : vector<128x160xf32>
    %8 = vector.extract_strided_slice %7 {offsets = [0, 0], sizes = [128, 16], strides = [1, 1]} : vector<128x160xf32> to vector<128x16xf32>
    %9 = arith.truncf %8 : vector<128x16xf32> to vector<128x16xbf16>
    %c0_6 = arith.constant 0 : index
    %c0_7 = arith.constant 0 : index
    %c0_8 = arith.constant 0 : index
    %10 = vector.load %arg5[%c0_6, %c0_7, %c0_8] : memref<1x128x16xbf16, #tpu.memory_space<vmem>>, vector<1x128x16xbf16>
    %11 = vector.shape_cast %10 : vector<1x128x16xbf16> to vector<128x16xbf16>
    %12 = vector.shape_cast %9 : vector<128x16xbf16> to vector<1x128x16xbf16>
    tpu.vector_store %arg5[%c0_6, %c0_7, %c0_8], %12 {strides = array<i32>} : memref<1x128x16xbf16, #tpu.memory_space<vmem>>, vector<1x128x16xbf16>,
    %13 = vector.extract_strided_slice %7 {offsets = [0, 16], sizes = [128, 16], strides = [1, 1]} : vector<128x160xf32> to vector<128x16xf32>
    %14 = arith.truncf %13 : vector<128x16xf32> to vector<128x16xbf16>
    %c0_9 = arith.constant 0 : index
    %c0_10 = arith.constant 0 : index
    %c0_11 = arith.constant 0 : index
    %15 = vector.load %arg6[%c0_9, %c0_10, %c0_11] : memref<1x128x16xbf16, #tpu.memory_space<vmem>>, vector<1x128x16xbf16>
    %16 = vector.shape_cast %15 : vector<1x128x16xbf16> to vector<128x16xbf16>
    %17 = vector.shape_cast %14 : vector<128x16xbf16> to vector<1x128x16xbf16>
    tpu.vector_store %arg6[%c0_9, %c0_10, %c0_11], %17 {strides = array<i32>} : memref<1x128x16xbf16, #tpu.memory_space<vmem>>, vector<1x128x16xbf16>,
    %18 = vector.extract_strided_slice %7 {offsets = [0, 32], sizes = [128, 128], strides = [1, 1]} : vector<128x160xf32> to vector<128x128xf32>
    %19 = arith.truncf %18 : vector<128x128xf32> to vector<128x128xbf16>
    %c0_12 = arith.constant 0 : index
    %c0_13 = arith.constant 0 : index
    %c0_14 = arith.constant 0 : index
    %20 = vector.load %arg7[%c0_12, %c0_13, %c0_14] : memref<1x128x128xbf16, #tpu.memory_space<vmem>>, vector<1x128x128xbf16>
    %21 = vector.shape_cast %20 : vector<1x128x128xbf16> to vector<128x128xbf16>
    %22 = vector.shape_cast %19 : vector<128x128xbf16> to vector<1x128x128xbf16>
    tpu.vector_store %arg7[%c0_12, %c0_13, %c0_14], %22 {strides = array<i32>} : memref<1x128x128xbf16, #tpu.memory_space<vmem>>, vector<1x128x128xbf16>,
    return
  }
  func.func @transform_0(%arg0: i32, %arg1: i32) -> (i32, i32, i32) {
    %c0_i32 = arith.constant 0 : i32
    %c0_i32_0 = arith.constant 0 : i32
    return %arg0, %arg1, %c0_i32 : i32, i32, i32
  }
  func.func @transform_1(%arg0: i32, %arg1: i32) -> (i32, i32) {
    %c0_i32 = arith.constant 0 : i32
    %c0_i32_0 = arith.constant 0 : i32
    %c0_i32_1 = arith.constant 0 : i32
    return %c0_i32, %c0_i32_0 : i32, i32
  }
  func.func @transform_2(%arg0: i32, %arg1: i32) -> (i32, i32) {
    %c0_i32 = arith.constant 0 : i32
    %c0_i32_0 = arith.constant 0 : i32
    %c0_i32_1 = arith.constant 0 : i32
    return %c0_i32, %c0_i32_0 : i32, i32
  }
  func.func @transform_3(%arg0: i32, %arg1: i32) -> (i32, i32, i32) {
    %c0_i32 = arith.constant 0 : i32
    %c0_i32_0 = arith.constant 0 : i32
    return %arg0, %arg1, %c0_i32 : i32, i32, i32
  }
  func.func @transform_4(%arg0: i32, %arg1: i32) -> (i32, i32, i32) {
    %c0_i32 = arith.constant 0 : i32
    %c0_i32_0 = arith.constant 0 : i32
    return %arg0, %arg1, %c0_i32 : i32, i32, i32
  }
  func.func @transform_5(%arg0: i32, %arg1: i32) -> (i32, i32, i32) {
    %c0_i32 = arith.constant 0 : i32
    %c0_i32_0 = arith.constant 0 : i32
    return %arg0, %arg1, %c0_i32 : i32, i32, i32
  }
}

</mosaic_0001>

<llo_original>
// kernel: tpu_custom_call.1
$region0: #{tpu_custom_call.1}
  #allocation0 [shape = 'u32[]', space=smem, size = 0x4, offset = 0x4, fixed_abs, tag = 'smem constant byte address 0x4 - core index']
  #allocation1 [shape = 'u32[144,128]{1,0:T(1,128)}', space=vmem, size = 0x12000, scoped, tag = 'internal scratch']
  %s0 = inlined_call_operand.hbm [shape: f32[2,256,128], index: 0, kind: input, shape index: {}]
  %s1 = inlined_call_operand.vmem [shape: bf16[128,160], index: 1, kind: input, shape index: {}]
  %s2 = inlined_call_operand.vmem [shape: f32[1,160], index: 2, kind: input, shape index: {}]
  %s3 = inlined_call_operand.vmem [shape: bf16[2,256,16], index: 3, kind: output, shape index: {0}]
  %s4 = inlined_call_operand.vmem [shape: bf16[2,256,16], index: 4, kind: output, shape index: {1}]
  %s5 = inlined_call_operand.hbm [shape: bf16[2,256,128], index: 5, kind: output, shape index: {2}]
  %6 = xla_tuple %s3, %s4, %s5
  %s7 = sld [smem:[#allocation0]]
  $region65: #{tpu_custom_call.1} parent=0
    _
  %s9 = ssub.s32 1, %s7
  %s10 = scalar_select 0, %s9, %s7
  $region1: #{tpu_custom_call.1} parent=0
    #allocation2 [shape = 'u8[131072]{0}', space=vmem, size = 0x20000, scoped, tag = 'input window, operand 0']
    #allocation3 [shape = 's32[2]{0}', space=sflag, size = 0x8, scoped, tag = 'scoped memory for tpu_custom_call.1']
    #allocation4 [shape = 's32[2]{0}', space=sflag, size = 0x8, scoped, tag = 'scoped memory for tpu_custom_call.1']
    #allocation5 [shape = 'u8[65536]{0}', space=vmem, size = 0x10000, scoped, tag = 'output window, operand 2']
    %11 = vsyncpa [#allocation3], 0
    %s12 = scalar_lea.sflag [#allocation3], 1
    %13 = vsyncpa %s12, 0
    %14 = vsyncpa [#allocation4], 0
    %s15 = scalar_lea.sflag [#allocation4], 1
    %16 = vsyncpa %s15, 0
    loop: start=0, step=1, limit=6
    $region2: #{tpu_custom_call.1} parent=1 // loop_pre_header
      _
    $region3: #{tpu_custom_call.1} parent=1 // loop_header
      %s18 = sphi 0, %s22
      %p19 = scmp.ge.s32.totalorder %s18, 6
      %s25 = sphi 0, %s37
      %s26 = sphi 0, %s33
      %s27 = sphi 0, %s25
      %s28 = sphi 0, %s26
      %s29 = sphi 0, %s27
      %s30 = sphi 0, %s28
      %s42 = sphi 0, %s44
      %s45 = sphi 0, %s42
      %s46 = sphi 0, %s45
      %s62 = sphi 0, %s46
      %s66 = sphi 0, %s66
      %s68 = sphi 0, %s66
      %s69 = sphi 0, %s68
      %s83 = sphi 0, %s69
      %s87 = sphi 0, %s87
      %s89 = sphi 0, %s87
      %s90 = sphi 0, %s89
      %s104 = sphi 0, %s90
      %s112 = sphi 0, %s114
      %s115 = sphi 0, %s112
      %s116 = sphi 0, %s115
      %s132 = sphi 0, %s116
      %s140 = sphi 0, %s142
      %s143 = sphi 0, %s140
      %s144 = sphi 0, %s143
      %s160 = sphi 0, %s144
      %s168 = sphi 0, %s170
      %s171 = sphi 0, %s168
      %s172 = sphi 0, %s171
      %s188 = sphi 0, %s172
    $region4: #{tpu_custom_call.1} parent=1 // loop_header_branch
      %21 = sbr.rel (%p19) target = $region8
    $region5: #{tpu_custom_call.1} parent=1 // loop_body
      %s23 = ssub.s32 %s18, 1
      %s24 = ssub.s32 %s18, 2
      %s31 = sadd.s32 1, %s26
      %p32 = scmp.ge.s32.totalorder %s31, 2
      %s33 = scalar_select %p32, 0, %s31
      %s34 = sadd.s32 1, %s25
      %s35 = scalar_select %p32, %s34, %s25
      %p36 = scmp.ge.s32.totalorder %s35, 2
      %s37 = scalar_select %p36, 0, %s35
      %s38 = ssub.s32 %s25, %s37
      %s39 = ssub.s32 %s26, %s33
      %s40 = sor.u32 %s38, %s39
      %p41 = scmp.eq.s32.totalorder %s40, 0
      %s43 = sadd.s32 %s42, 1
      %s44 = scalar_select %p41, %s42, %s43
      %p47 = pneg %p41
      %p48 = scmp.eq.s32.totalorder %s18, 3
      %p49 = por %p47, %p48
      %p50 = scmp.ne.s32.totalorder %s42, %s45
      %p51 = scmp.eq.s32.totalorder %s18, 0
      %p52 = por %p50, %p51
      %p53 = scmp.ne.s32.totalorder %s42, %s45
      %p54 = scmp.eq.s32.totalorder %s23, 3
      %p55 = por %p53, %p54
      %p56 = scmp.ne.s32.totalorder %s45, %s46
      %p57 = scmp.eq.s32.totalorder %s23, 0
      %p58 = por %p56, %p57
      %p59 = scmp.ne.s32.totalorder %s45, %s46
      %p60 = scmp.eq.s32.totalorder %s24, 3
      %p61 = por %p59, %p60
      %p63 = scmp.ne.s32.totalorder %s46, %s62
      %p64 = scmp.eq.s32.totalorder %s24, 0
      %p65 = por %p63, %p64
      %s67 = sadd.s32 %s66, 1
      %p70 = scmp.eq.s32.totalorder %s18, 3
      %p71 = scmp.ne.s32.totalorder %s66, %s68
      %p72 = scmp.eq.s32.totalorder %s18, 0
      %p73 = por %p71, %p72
      %p74 = scmp.ne.s32.totalorder %s66, %s68
      %p75 = scmp.eq.s32.totalorder %s23, 3
      %p76 = por %p74, %p75
      %p77 = scmp.ne.s32.totalorder %s68, %s69
      %p78 = scmp.eq.s32.totalorder %s23, 0
      %p79 = por %p77, %p78
      %p80 = scmp.ne.s32.totalorder %s68, %s69
      %p81 = scmp.eq.s32.totalorder %s24, 3
      %p82 = por %p80, %p81
      %p84 = scmp.ne.s32.totalorder %s69, %s83
      %p85 = scmp.eq.s32.totalorder %s24, 0
      %p86 = por %p84, %p85
      %s88 = sadd.s32 %s87, 1
      %p91 = scmp.eq.s32.totalorder %s18, 3
      %p92 = scmp.ne.s32.totalorder %s87, %s89
      %p93 = scmp.eq.s32.totalorder %s18, 0
      %p94 = por %p92, %p93
      %p95 = scmp.ne.s32.totalorder %s87, %s89
      %p96 = scmp.eq.s32.totalorder %s23, 3
      %p97 = por %p95, %p96
      %p98 = scmp.ne.s32.totalorder %s89, %s90
      %p99 = scmp.eq.s32.totalorder %s23, 0
      %p100 = por %p98, %p99
      %p101 = scmp.ne.s32.totalorder %s89, %s90
      %p102 = scmp.eq.s32.totalorder %s24, 3
      %p103 = por %p101, %p102
      %p105 = scmp.ne.s32.totalorder %s90, %s104
      %p106 = scmp.eq.s32.totalorder %s24, 0
      %p107 = por %p105, %p106
      %s108 = ssub.s32 %s25, %s37
      %s109 = ssub.s32 %s26, %s33
      %s110 = sor.u32 %s108, %s109
      %p111 = scmp.eq.s32.totalorder %s110, 0
      %s113 = sadd.s32 %s112, 1
      %s114 = scalar_select %p111, %s112, %s113
      %p117 = pneg %p111
      %p118 = scmp.eq.s32.totalorder %s18, 3
      %p119 = por %p117, %p118
      %p120 = scmp.ne.s32.totalorder %s112, %s115
      %p121 = scmp.eq.s32.totalorder %s18, 0
      %p122 = por %p120, %p121
      %p123 = scmp.ne.s32.totalorder %s112, %s115
      %p124 = scmp.eq.s32.totalorder %s23, 3
      %p125 = por %p123, %p124
      %p126 = scmp.ne.s32.totalorder %s115, %s116
      %p127 = scmp.eq.s32.totalorder %s23, 0
      %p128 = por %p126, %p127
      %p129 = scmp.ne.s32.totalorder %s115, %s116
      %p130 = scmp.eq.s32.totalorder %s24, 3
      %p131 = por %p129, %p130
      %p133 = scmp.ne.s32.totalorder %s116, %s132
      %p134 = scmp.eq.s32.totalorder %s24, 0
      %p135 = por %p133, %p134
      %s136 = ssub.s32 %s25, %s37
      %s137 = ssub.s32 %s26, %s33
      %s138 = sor.u32 %s136, %s137
      %p139 = scmp.eq.s32.totalorder %s138, 0
      %s141 = sadd.s32 %s140, 1
      %s142 = scalar_select %p139, %s140, %s141
      %p145 = pneg %p139
      %p146 = scmp.eq.s32.totalorder %s18, 3
      %p147 = por %p145, %p146
      %p148 = scmp.ne.s32.totalorder %s140, %s143
      %p149 = scmp.eq.s32.totalorder %s18, 0
      %p150 = por %p148, %p149
      %p151 = scmp.ne.s32.totalorder %s140, %s143
      %p152 = scmp.eq.s32.totalorder %s23, 3
      %p153 = por %p151, %p152
      %p154 = scmp.ne.s32.totalorder %s143, %s144
      %p155 = scmp.eq.s32.totalorder %s23, 0
      %p156 = por %p154, %p155
      %p157 = scmp.ne.s32.totalorder %s143, %s144
      %p158 = scmp.eq.s32.totalorder %s24, 3
      %p159 = por %p157, %p158
      %p161 = scmp.ne.s32.totalorder %s144, %s160
      %p162 = scmp.eq.s32.totalorder %s24, 0
      %p163 = por %p161, %p162
      %s164 = ssub.s32 %s25, %s37
      %s165 = ssub.s32 %s26, %s33
      %s166 = sor.u32 %s164, %s165
      %p167 = scmp.eq.s32.totalorder %s166, 0
      %s169 = sadd.s32 %s168, 1
      %s170 = scalar_select %p167, %s168, %s169
      %p173 = pneg %p167
      %p174 = scmp.eq.s32.totalorder %s18, 3
      %p175 = por %p173, %p174
      %p176 = scmp.ne.s32.totalorder %s168, %s171
      %p177 = scmp.eq.s32.totalorder %s18, 0
      %p178 = por %p176, %p177
      %p179 = scmp.ne.s32.totalorder %s168, %s171
      %p180 = scmp.eq.s32.totalorder %s23, 3
      %p181 = por %p179, %p180
      %p182 = scmp.ne.s32.totalorder %s171, %s172
      %p183 = scmp.eq.s32.totalorder %s23, 0
      %p184 = por %p182, %p183
      %p185 = scmp.ne.s32.totalorder %s171, %s172
      %p186 = scmp.eq.s32.totalorder %s24, 3
      %p187 = por %p185, %p186
      %p189 = scmp.ne.s32.totalorder %s172, %s188
      %p190 = scmp.eq.s32.totalorder %s24, 0
      %p191 = por %p189, %p190
      %p192 = scmp.le.s32.totalorder 1, %s18
      %p193 = scmp.lt.s32.totalorder %s18, 5
      %p194 = pnand %p192, %p193
      %p195 = pneg %p194
      // Predicated region
      $region9: #{tpu_custom_call.1} parent=5 // pred_check
        _
      $region10: #{tpu_custom_call.1} parent=5 // pred_check_branch
        %197 = sbr.rel (%p194) target = $region12
      $region11: #{tpu_custom_call.1} parent=5 // pred_region
        %s198 = ssub.s32 %s18, 1
        // Predicated region
        $region13: #{tpu_custom_call.1} parent=11 // pred_check
          %p199 = pneg %p79
        $region14: #{tpu_custom_call.1} parent=11 // pred_check_branch
          %201 = sbr.rel (%p199) target = $region16
        $region15: #{tpu_custom_call.1} parent=11 // pred_region
          _
        $region16: #{tpu_custom_call.1} parent=11 // pred_fallthru
          _
        // Predicated region
        $region17: #{tpu_custom_call.1} parent=11 // pred_check
          %p202 = pneg %p100
        $region18: #{tpu_custom_call.1} parent=11 // pred_check_branch
          %204 = sbr.rel (%p202) target = $region20
        $region19: #{tpu_custom_call.1} parent=11 // pred_region
          _
        $region20: #{tpu_custom_call.1} parent=11 // pred_fallthru
          _
      $region12: #{tpu_custom_call.1} parent=5 // pred_fallthru
        _
      %p205 = scmp.lt.s32.totalorder %s18, 4
      // Predicated region
      $region21: #{tpu_custom_call.1} parent=5 // pred_check
        %p206 = pneg %p205
      $region22: #{tpu_custom_call.1} parent=5 // pred_check_branch
        %208 = sbr.rel (%p206) target = $region24
      $region23: #{tpu_custom_call.1} parent=5 // pred_region
        // Predicated region
        $region25: #{tpu_custom_call.1} parent=23 // pred_check
          %p209 = pneg %p52
        $region26: #{tpu_custom_call.1} parent=23 // pred_check_branch
          %211 = sbr.rel (%p209) target = $region28
        $region27: #{tpu_custom_call.1} parent=23 // pred_region
          %s212 = sand.u32 %s42, 1
          %s213 = scalar_lea.sflag [#allocation3], %s212
          %s214 = sand.u32 %s42, 1
          %s215 = smul.addr %s214, 128
          %s216 = scalar_lea.vmem [#allocation2], %s215
          %s217 = smul.u32 16, %s26
          %s219 = ssub.s32 2048, 2048
          %220 = vsyncadd %s213, %s219
          %s221 = smul.addr %s25, 32
          %s222 = sadd.s32 %s217, %s221
          %s223 = smul.addr %s222, 128
          %s224 = scalar_lea.hbm %s0, %s223
          %s225 = sshll.u32 %s216, 4
          %s226 = int_to_ptr.vmem [resolvable:$true] %s225
          %231 = dma.hbm_to_vmem [thread:$0]  %s224, 2048, %s226, %s213, 128, 128, 8
        $region28: #{tpu_custom_call.1} parent=23 // pred_fallthru
          _
      $region24: #{tpu_custom_call.1} parent=5 // pred_fallthru
        _
      %p232 = scmp.le.s32.totalorder 1, %s18
      %p233 = scmp.lt.s32.totalorder %s18, 5
      %p234 = pnand %p232, %p233
      %p235 = pneg %p234
      // Predicated region
      $region29: #{tpu_custom_call.1} parent=5 // pred_check
        _
      $region30: #{tpu_custom_call.1} parent=5 // pred_check_branch
        %237 = sbr.rel (%p234) target = $region32
      $region31: #{tpu_custom_call.1} parent=5 // pred_region
        %s238 = ssub.s32 %s18, 1
        %s239 = sand.u32 %s45, 1
        %s240 = scalar_lea.sflag [#allocation3], %s239
        %s241 = sand.u32 %s45, 1
        %s242 = smul.addr %s241, 128
        %s243 = scalar_lea.vmem [#allocation2], %s242
        // Predicated region
        $region33: #{tpu_custom_call.1} parent=31 // pred_check
          %p244 = pneg %p58
        $region34: #{tpu_custom_call.1} parent=31 // pred_check_branch
          %246 = sbr.rel (%p244) target = $region36
        $region35: #{tpu_custom_call.1} parent=31 // pred_region
          %247 = dma.done %s240, 2048
        $region36: #{tpu_custom_call.1} parent=31 // pred_fallthru
          _
        %s248 = sand.u32 %s45, 1
        %s249 = scalar_lea.sflag [#allocation3], %s248
        %s250 = sand.u32 %s45, 1
        %s251 = smul.addr %s250, 128
        %s252 = scalar_lea.vmem [#allocation2], %s251
        %p253 = pneg %p58
        %p254 = pneg %p55
        %p255 = pneg %p79
        %p256 = pneg %p76
        %p257 = pneg %p100
        %p258 = pneg %p97
        %p259 = pneg %p128
        %p260 = pneg %p125
        %s261 = smul.u32 16, %s28
        %p262 = scmp.lt.s32.totalorder %s27, 1
        %s263 = scalar_select %p262, %s27, 1
        %p264 = scmp.lt.s32.totalorder %s261, 31
        %s265 = scalar_select %p264, %s261, 31
        %s266 = smul.addr %s263, 32
        %s267 = sadd.s32 %s265, %s266
        %s268 = smul.addr %s267, 4
        %s269 = scalar_lea.vmem %s3, %s268
        %p270 = pneg %p156
        %p271 = pneg %p153
        %s272 = smul.u32 16, %s28
        %p273 = scmp.lt.s32.totalorder %s27, 1
        %s274 = scalar_select %p273, %s27, 1
        %p275 = scmp.lt.s32.totalorder %s272, 31
        %s276 = scalar_select %p275, %s272, 31
        %s277 = smul.addr %s274, 32
        %s278 = sadd.s32 %s276, %s277
        %s279 = smul.addr %s278, 4
        %s280 = scalar_lea.vmem %s4, %s279
        %p281 = pneg %p184
        %p282 = pneg %p181
        %s283 = sand.u32 %s171, 1
        %s284 = scalar_lea.sflag [#allocation4], %s283
        %s285 = sand.u32 %s171, 1
        %s286 = smul.addr %s285, 64
        %s287 = scalar_lea.vmem [#allocation5], %s286
        %s288 = smul.u32 16, %s28
        %s289 = smul.u32 16, %s28
        %p290 = scmp.lt.s32.totalorder %s27, 1
        %s291 = scalar_select %p290, %s27, 1
        %p292 = scmp.lt.s32.totalorder %s289, 31
        %s293 = scalar_select %p292, %s289, 31
        %s294 = smul.addr %s291, 32
        %s295 = sadd.s32 %s293, %s294
        %s296 = smul.addr %s295, 4
        %s297 = scalar_lea.vmem %s3, %s296
        %s298 = smul.u32 16, %s28
        %s299 = smul.u32 16, %s28
        %p300 = scmp.lt.s32.totalorder %s27, 1
        %s301 = scalar_select %p300, %s27, 1
        %p302 = scmp.lt.s32.totalorder %s299, 31
        %s303 = scalar_select %p302, %s299, 31
        %s304 = smul.addr %s301, 32
        %s305 = sadd.s32 %s303, %s304
        %s306 = smul.addr %s305, 4
        %s307 = scalar_lea.vmem %s4, %s306
        %s308 = smul.u32 16, %s28
        %s309 = smul.u32 16, %s28
        %v311 = vld [vmem:[%s243] sm:$0xff]
        %v312 = vld [vmem:[%s243 + $0x8] sm:$0xff]
        %v313 = vld [vmem:[%s243 + $0x10] sm:$0xff]
        %v314 = vld [vmem:[%s243 + $0x18] sm:$0xff]
        %v315 = vld [vmem:[%s243 + $0x20] sm:$0xff]
        %v316 = vld [vmem:[%s243 + $0x28] sm:$0xff]
        %v317 = vld [vmem:[%s243 + $0x30] sm:$0xff]
        %v318 = vld [vmem:[%s243 + $0x38] sm:$0xff]
        %v319 = vld [vmem:[%s243 + $0x40] sm:$0xff]
        %v320 = vld [vmem:[%s243 + $0x48] sm:$0xff]
        %v321 = vld [vmem:[%s243 + $0x50] sm:$0xff]
        %v322 = vld [vmem:[%s243 + $0x58] sm:$0xff]
        %v323 = vld [vmem:[%s243 + $0x60] sm:$0xff]
        %v324 = vld [vmem:[%s243 + $0x68] sm:$0xff]
        %v325 = vld [vmem:[%s243 + $0x70] sm:$0xff]
        %v326 = vld [vmem:[%s243 + $0x78] sm:$0xff]
        %v327 = vpack.c.bf16 %v312, %v311
        %v328 = vpack.c.bf16 %v314, %v313
        %v329 = vpack.c.bf16 %v316, %v315
        %v330 = vpack.c.bf16 %v318, %v317
        %v331 = vpack.c.bf16 %v320, %v319
        %v332 = vpack.c.bf16 %v322, %v321
        %v333 = vpack.c.bf16 %v324, %v323
        %v334 = vpack.c.bf16 %v326, %v325
        %v335 = vld [vmem:[%s1] sm:$0xff]
        %v336 = vld [vmem:[%s1 + $0x8] sm:$0xff]
        %v337 = vld [vmem:[%s1 + $0x10] sm:$0xff]
        %v338 = vld [vmem:[%s1 + $0x18] sm:$0xff]
        %v339 = vld [vmem:[%s1 + $0x20] sm:$0xff]
        %v340 = vld [vmem:[%s1 + $0x28] sm:$0xff]
        %v341 = vld [vmem:[%s1 + $0x30] sm:$0xff]
        %v342 = vld [vmem:[%s1 + $0x38] sm:$0xff]
        %v343 = vld [vmem:[%s1 + $0x40] sm:$0xff]
        %v344 = vld [vmem:[%s1 + $0x48] sm:$0xff]
        %v345 = vld [vmem:[%s1 + $0x50] sm:$0xff]
        %v346 = vld [vmem:[%s1 + $0x58] sm:$0xff]
        %v347 = vld [vmem:[%s1 + $0x60] sm:$0xff]
        %v348 = vld [vmem:[%s1 + $0x68] sm:$0xff]
        %v349 = vld [vmem:[%s1 + $0x70] sm:$0xff]
        %v350 = vld [vmem:[%s1 + $0x78] sm:$0xff]
        %v351 = vld [vmem:[%s2] sm:$0x3]
        %v353 = vlaneseq
        %v354 = vshrl.u32 %v353, 7
        %v355 = vsub.s32 0, %v354
        %v356 = vrot.slane %v351, %v355
        %v357 = vlaneseq
        %v358 = vshrl.u32 %v357, 7
        %v359 = vsub.s32 1, %v358
        %v360 = vrot.slane %v351, %v359
        %v379 = vunpack.c.l.b16 %v335
        %v380 = vunpack.c.h.b16 %v335
        %v381 = vunpack.c.l.b16 %v336
        %v382 = vunpack.c.h.b16 %v336
        %v383 = vunpack.c.l.b16 %v337
        %v384 = vunpack.c.h.b16 %v337
        %v385 = vunpack.c.l.b16 %v338
        %v386 = vunpack.c.h.b16 %v338
        %v387 = vunpack.c.l.b16 %v339
        %v388 = vunpack.c.h.b16 %v339
        %v389 = vunpack.c.l.b16 %v340
        %v390 = vunpack.c.h.b16 %v340
        %v391 = vunpack.c.l.b16 %v341
        %v392 = vunpack.c.h.b16 %v341
        %v393 = vunpack.c.l.b16 %v342
        %v394 = vunpack.c.h.b16 %v342
        %v395 = vunpack.c.l.b16 %v343
        %v396 = vunpack.c.h.b16 %v343
        %v397 = vunpack.c.l.b16 %v344
        %v398 = vunpack.c.h.b16 %v344
        %v399 = vunpack.c.l.b16 %v345
        %v400 = vunpack.c.h.b16 %v345
        %v401 = vunpack.c.l.b16 %v346
        %v402 = vunpack.c.h.b16 %v346
        %v403 = vunpack.c.l.b16 %v347
        %v404 = vunpack.c.h.b16 %v347
        %v405 = vunpack.c.l.b16 %v348
        %v406 = vunpack.c.h.b16 %v348
        %v407 = vunpack.c.l.b16 %v349
        %v408 = vunpack.c.h.b16 %v349
        %v409 = vunpack.c.l.b16 %v350
        %v410 = vunpack.c.h.b16 %v350
        %v411 = vpack.c.b16 %v381, %v379
        %v412 = vpack.c.b16 %v382, %v380
        %v413 = vpack.c.b16 %v385, %v383
        %v414 = vpack.c.b16 %v386, %v384
        %v415 = vpack.c.b16 %v389, %v387
        %v416 = vpack.c.b16 %v390, %v388
        %v417 = vpack.c.b16 %v393, %v391
        %v418 = vpack.c.b16 %v394, %v392
        %v419 = vpack.c.b16 %v397, %v395
        %v420 = vpack.c.b16 %v398, %v396
        %v421 = vpack.c.b16 %v401, %v399
        %v422 = vpack.c.b16 %v402, %v400
        %v423 = vpack.c.b16 %v405, %v403
        %v424 = vpack.c.b16 %v406, %v404
        %v425 = vpack.c.b16 %v409, %v407
        %v426 = vpack.c.b16 %v410, %v408
        %443 = vmatprep.subr.bf16.mxu0 %v426
        %444 = vmatpush1.bf16.msra.mxu0 %v425
        %445 = vmatprep.subr.bf16.mxu0 %v424
        %446 = vmatpush1.bf16.msra.mxu0 %v423
        %447 = vmatprep.subr.bf16.mxu0 %v422
        %448 = vmatpush1.bf16.msra.mxu0 %v421
        %449 = vmatprep.subr.bf16.mxu0 %v420
        %450 = vmatpush1.bf16.msra.mxu0 %v419
        %451 = vmatprep.subr.bf16.mxu0 %v418
        %452 = vmatpush1.bf16.msra.mxu0 %v417
        %453 = vmatprep.subr.bf16.mxu0 %v416
        %454 = vmatpush1.bf16.msra.mxu0 %v415
        %455 = vmatprep.subr.bf16.mxu0 %v414
        %456 = vmatpush1.bf16.msra.mxu0 %v413
        %457 = vmatprep.subr.bf16.mxu0 %v412
        %458 = vmatpush1.bf16.msra.mxu0 %v411
        %459 = vmatprep.subr.bf16.mxu0 0
        %460 = vmatpush2.bf16.msra.mxu0 0
        %461 = vmatprep.subr.bf16.mxu0 0
        %462 = vmatpush2.bf16.msra.mxu0 0
        %463 = vmatprep.subr.bf16.mxu0 0
        %464 = vmatpush2.bf16.msra.mxu0 0
        %465 = vmatprep.subr.bf16.mxu0 0
        %466 = vmatpush2.bf16.msra.mxu0 0
        %467 = vmatprep.subr.bf16.mxu0 0
        %468 = vmatpush2.bf16.msra.mxu0 0
        %469 = vmatprep.subr.bf16.mxu0 0
        %470 = vmatpush2.bf16.msra.mxu0 0
        %471 = vmatprep.subr.bf16.mxu0 0
        %472 = vmatpush2.bf16.msra.mxu0 0
        %473 = vmatprep.subr.bf16.mxu0 0
        %474 = vmatpush2.bf16.msra.mxu0 0
        %475 = vmatprep.mubr.bf16.mxu0 0
        %476 = vmatmul.mubr.bf16.gmra.mxu0 %v327
        %v477 = vpop.f32.mrf.mxu0
        %v478 = vadd.f32 %v356, %v477
        %v479 = vpop.f32.mrf.mxu0
        %v480 = vadd.f32 %v360, %v479
        %v481 = vpop.f32.mrf.mxu0
        %v482 = vadd.f32 %v356, %v481
        %v483 = vpop.f32.mrf.mxu0
        %v484 = vadd.f32 %v360, %v483
        %485 = vmatprep.mubr.bf16.mxu0 0
        %486 = vmatmul.mubr.bf16.gmra.mxu0 %v328
        %v487 = vpop.f32.mrf.mxu0
        %v488 = vadd.f32 %v356, %v487
        %v489 = vpop.f32.mrf.mxu0
        %v490 = vadd.f32 %v360, %v489
        %v491 = vpop.f32.mrf.mxu0
        %v492 = vadd.f32 %v356, %v491
        %v493 = vpop.f32.mrf.mxu0
        %v494 = vadd.f32 %v360, %v493
        %495 = vmatprep.mubr.bf16.mxu0 0
        %496 = vmatmul.mubr.bf16.gmra.mxu0 %v329
        %v497 = vpop.f32.mrf.mxu0
        %v498 = vadd.f32 %v356, %v497
        %v499 = vpop.f32.mrf.mxu0
        %v500 = vadd.f32 %v360, %v499
        %v501 = vpop.f32.mrf.mxu0
        %v502 = vadd.f32 %v356, %v501
        %v503 = vpop.f32.mrf.mxu0
        %v504 = vadd.f32 %v360, %v503
        %505 = vmatprep.mubr.bf16.mxu0 0
        %506 = vmatmul.mubr.bf16.gmra.mxu0 %v330
        %v507 = vpop.f32.mrf.mxu0
        %v508 = vadd.f32 %v356, %v507
        %v509 = vpop.f32.mrf.mxu0
        %v510 = vadd.f32 %v360, %v509
        %v511 = vpop.f32.mrf.mxu0
        %v512 = vadd.f32 %v356, %v511
        %v513 = vpop.f32.mrf.mxu0
        %v514 = vadd.f32 %v360, %v513
        %515 = vmatprep.mubr.bf16.mxu0 0
        %516 = vmatmul.mubr.bf16.gmra.mxu0 %v331
        %v517 = vpop.f32.mrf.mxu0
        %v518 = vadd.f32 %v356, %v517
        %v519 = vpop.f32.mrf.mxu0
        %v520 = vadd.f32 %v360, %v519
        %v521 = vpop.f32.mrf.mxu0
        %v522 = vadd.f32 %v356, %v521
        %v523 = vpop.f32.mrf.mxu0
        %v524 = vadd.f32 %v360, %v523
        %525 = vmatprep.mubr.bf16.mxu0 0
        %526 = vmatmul.mubr.bf16.gmra.mxu0 %v332
        %v527 = vpop.f32.mrf.mxu0
        %v528 = vadd.f32 %v356, %v527
        %v529 = vpop.f32.mrf.mxu0
        %v530 = vadd.f32 %v360, %v529
        %v531 = vpop.f32.mrf.mxu0
        %v532 = vadd.f32 %v356, %v531
        %v533 = vpop.f32.mrf.mxu0
        %v534 = vadd.f32 %v360, %v533
        %535 = vmatprep.mubr.bf16.mxu0 0
        %536 = vmatmul.mubr.bf16.gmra.mxu0 %v333
        %v537 = vpop.f32.mrf.mxu0
        %v538 = vadd.f32 %v356, %v537
        %v539 = vpop.f32.mrf.mxu0
        %v540 = vadd.f32 %v360, %v539
        %v541 = vpop.f32.mrf.mxu0
        %v542 = vadd.f32 %v356, %v541
        %v543 = vpop.f32.mrf.mxu0
        %v544 = vadd.f32 %v360, %v543
        %545 = vmatprep.mubr.bf16.mxu0 0
        %546 = vmatmul.mubr.bf16.gmra.mxu0 %v334
        %v547 = vpop.f32.mrf.mxu0
        %v548 = vadd.f32 %v356, %v547
        %v549 = vpop.f32.mrf.mxu0
        %v550 = vadd.f32 %v360, %v549
        %v551 = vpop.f32.mrf.mxu0
        %v552 = vadd.f32 %v356, %v551
        %v553 = vpop.f32.mrf.mxu0
        %v554 = vadd.f32 %v360, %v553
        %555 = vdwg.mxu0
        %v556 = vpack.c.bf16 %v482, %v478
        %v557 = vpack.c.bf16 %v492, %v488
        %v558 = vpack.c.bf16 %v502, %v498
        %v559 = vpack.c.bf16 %v512, %v508
        %v560 = vpack.c.bf16 %v522, %v518
        %v561 = vpack.c.bf16 %v532, %v528
        %v562 = vpack.c.bf16 %v542, %v538
        %v563 = vpack.c.bf16 %v552, %v548
        %v572 = vunpack.c.l.b16 %v556
        %v573 = vunpack.c.h.b16 %v556
        %v574 = vunpack.c.l.b16 %v557
        %v575 = vunpack.c.h.b16 %v557
        %v576 = vunpack.c.l.b16 %v558
        %v577 = vunpack.c.h.b16 %v558
        %v578 = vunpack.c.l.b16 %v559
        %v579 = vunpack.c.h.b16 %v559
        %v580 = vunpack.c.l.b16 %v560
        %v581 = vunpack.c.h.b16 %v560
        %v582 = vunpack.c.l.b16 %v561
        %v583 = vunpack.c.h.b16 %v561
        %v584 = vunpack.c.l.b16 %v562
        %v585 = vunpack.c.h.b16 %v562
        %v586 = vunpack.c.l.b16 %v563
        %v587 = vunpack.c.h.b16 %v563
        %v588 = vpack.c.b16 %v572, %v572
        %v589 = vpack.c.b16 %v573, %v573
        %v590 = vpack.c.b16 %v574, %v574
        %v591 = vpack.c.b16 %v575, %v575
        %v592 = vpack.c.b16 %v576, %v576
        %v593 = vpack.c.b16 %v577, %v577
        %v594 = vpack.c.b16 %v578, %v578
        %v595 = vpack.c.b16 %v579, %v579
        %v596 = vpack.c.b16 %v580, %v580
        %v597 = vpack.c.b16 %v581, %v581
        %v598 = vpack.c.b16 %v582, %v582
        %v599 = vpack.c.b16 %v583, %v583
        %v600 = vpack.c.b16 %v584, %v584
        %v601 = vpack.c.b16 %v585, %v585
        %v602 = vpack.c.b16 %v586, %v586
        %v603 = vpack.c.b16 %v587, %v587
        %vm620 = vcmask 125952
        %621 = vst.msk [vmem:[%s297] sm:$0xf] %vm620, %v588
        %622 = vst.msk [vmem:[%s297 + $0x4] sm:$0xf] %vm620, %v589
        %623 = vst.msk [vmem:[%s297 + $0x8] sm:$0xf] %vm620, %v590
        %624 = vst.msk [vmem:[%s297 + $0xc] sm:$0xf] %vm620, %v591
        %625 = vst.msk [vmem:[%s297 + $0x10] sm:$0xf] %vm620, %v592
        %626 = vst.msk [vmem:[%s297 + $0x14] sm:$0xf] %vm620, %v593
        %627 = vst.msk [vmem:[%s297 + $0x18] sm:$0xf] %vm620, %v594
        %628 = vst.msk [vmem:[%s297 + $0x1c] sm:$0xf] %vm620, %v595
        %629 = vst.msk [vmem:[%s297 + $0x20] sm:$0xf] %vm620, %v596
        %630 = vst.msk [vmem:[%s297 + $0x24] sm:$0xf] %vm620, %v597
        %631 = vst.msk [vmem:[%s297 + $0x28] sm:$0xf] %vm620, %v598
        %632 = vst.msk [vmem:[%s297 + $0x2c] sm:$0xf] %vm620, %v599
        %633 = vst.msk [vmem:[%s297 + $0x30] sm:$0xf] %vm620, %v600
        %634 = vst.msk [vmem:[%s297 + $0x34] sm:$0xf] %vm620, %v601
        %635 = vst.msk [vmem:[%s297 + $0x38] sm:$0xf] %vm620, %v602
        %636 = vst.msk [vmem:[%s297 + $0x3c] sm:$0xf] %vm620, %v603
        %637 = vrot.lane.b32.xlu0 %v588, 112
        %v638 = vpop.permute.xlu0 %637
        %639 = vrot.lane.b32.xlu0 %v589, 112
        %v640 = vpop.permute.xlu0 %639
        %641 = vrot.lane.b32.xlu0 %v590, 112
        %v642 = vpop.permute.xlu0 %641
        %643 = vrot.lane.b32.xlu0 %v591, 112
        %v644 = vpop.permute.xlu0 %643
        %645 = vrot.lane.b32.xlu0 %v592, 112
        %v646 = vpop.permute.xlu0 %645
        %647 = vrot.lane.b32.xlu0 %v593, 112
        %v648 = vpop.permute.xlu0 %647
        %649 = vrot.lane.b32.xlu0 %v594, 112
        %v650 = vpop.permute.xlu0 %649
        %651 = vrot.lane.b32.xlu0 %v595, 112
        %v652 = vpop.permute.xlu0 %651
        %653 = vrot.lane.b32.xlu0 %v596, 112
        %v654 = vpop.permute.xlu0 %653
        %655 = vrot.lane.b32.xlu0 %v597, 112
        %v656 = vpop.permute.xlu0 %655
        %657 = vrot.lane.b32.xlu0 %v598, 112
        %v658 = vpop.permute.xlu0 %657
        %659 = vrot.lane.b32.xlu0 %v599, 112
        %v660 = vpop.permute.xlu0 %659
        %661 = vrot.lane.b32.xlu0 %v600, 112
        %v662 = vpop.permute.xlu0 %661
        %663 = vrot.lane.b32.xlu0 %v601, 112
        %v664 = vpop.permute.xlu0 %663
        %665 = vrot.lane.b32.xlu0 %v602, 112
        %v666 = vpop.permute.xlu0 %665
        %667 = vrot.lane.b32.xlu0 %v603, 112
        %v668 = vpop.permute.xlu0 %667
        %685 = vst.msk [vmem:[%s307] sm:$0xf] %vm620, %v638
        %686 = vst.msk [vmem:[%s307 + $0x4] sm:$0xf] %vm620, %v640
        %687 = vst.msk [vmem:[%s307 + $0x8] sm:$0xf] %vm620, %v642
        %688 = vst.msk [vmem:[%s307 + $0xc] sm:$0xf] %vm620, %v644
        %689 = vst.msk [vmem:[%s307 + $0x10] sm:$0xf] %vm620, %v646
        %690 = vst.msk [vmem:[%s307 + $0x14] sm:$0xf] %vm620, %v648
        %691 = vst.msk [vmem:[%s307 + $0x18] sm:$0xf] %vm620, %v650
        %692 = vst.msk [vmem:[%s307 + $0x1c] sm:$0xf] %vm620, %v652
        %693 = vst.msk [vmem:[%s307 + $0x20] sm:$0xf] %vm620, %v654
        %694 = vst.msk [vmem:[%s307 + $0x24] sm:$0xf] %vm620, %v656
        %695 = vst.msk [vmem:[%s307 + $0x28] sm:$0xf] %vm620, %v658
        %696 = vst.msk [vmem:[%s307 + $0x2c] sm:$0xf] %vm620, %v660
        %697 = vst.msk [vmem:[%s307 + $0x30] sm:$0xf] %vm620, %v662
        %698 = vst.msk [vmem:[%s307 + $0x34] sm:$0xf] %vm620, %v664
        %699 = vst.msk [vmem:[%s307 + $0x38] sm:$0xf] %vm620, %v666
        %700 = vst.msk [vmem:[%s307 + $0x3c] sm:$0xf] %vm620, %v668
        %v701 = vpack.c.bf16 %v484, %v480
        %v702 = vpack.c.bf16 %v494, %v490
        %v703 = vpack.c.bf16 %v504, %v500
        %v704 = vpack.c.bf16 %v514, %v510
        %v705 = vpack.c.bf16 %v524, %v520
        %v706 = vpack.c.bf16 %v534, %v530
        %v707 = vpack.c.bf16 %v544, %v540
        %v708 = vpack.c.bf16 %v554, %v550
        %v717 = vunpack.c.l.b16 %v701
        %v718 = vunpack.c.h.b16 %v701
        %v719 = vunpack.c.l.b16 %v702
        %v720 = vunpack.c.h.b16 %v702
        %v721 = vunpack.c.l.b16 %v703
        %v722 = vunpack.c.h.b16 %v703
        %v723 = vunpack.c.l.b16 %v704
        %v724 = vunpack.c.h.b16 %v704
        %v725 = vunpack.c.l.b16 %v705
        %v726 = vunpack.c.h.b16 %v705
        %v727 = vunpack.c.l.b16 %v706
        %v728 = vunpack.c.h.b16 %v706
        %v729 = vunpack.c.l.b16 %v707
        %v730 = vunpack.c.h.b16 %v707
        %v731 = vunpack.c.l.b16 %v708
        %v732 = vunpack.c.h.b16 %v708
        %v733 = vpack.c.b16 %v717, %v572
        %v734 = vpack.c.b16 %v718, %v573
        %v735 = vpack.c.b16 %v719, %v574
        %v736 = vpack.c.b16 %v720, %v575
        %v737 = vpack.c.b16 %v721, %v576
        %v738 = vpack.c.b16 %v722, %v577
        %v739 = vpack.c.b16 %v723, %v578
        %v740 = vpack.c.b16 %v724, %v579
        %v741 = vpack.c.b16 %v725, %v580
        %v742 = vpack.c.b16 %v726, %v581
        %v743 = vpack.c.b16 %v727, %v582
        %v744 = vpack.c.b16 %v728, %v583
        %v745 = vpack.c.b16 %v729, %v584
        %v746 = vpack.c.b16 %v730, %v585
        %v747 = vpack.c.b16 %v731, %v586
        %v748 = vpack.c.b16 %v732, %v587
        %749 = vrot.lane.b32.xlu0 %v733, 96
        %v750 = vpop.permute.xlu0 %749
        %751 = vrot.lane.b32.xlu0 %v734, 96
        %v752 = vpop.permute.xlu0 %751
        %753 = vrot.lane.b32.xlu0 %v735, 96
        %v754 = vpop.permute.xlu0 %753
        %755 = vrot.lane.b32.xlu0 %v736, 96
        %v756 = vpop.permute.xlu0 %755
        %757 = vrot.lane.b32.xlu0 %v737, 96
        %v758 = vpop.permute.xlu0 %757
        %759 = vrot.lane.b32.xlu0 %v738, 96
        %v760 = vpop.permute.xlu0 %759
        %761 = vrot.lane.b32.xlu0 %v739, 96
        %v762 = vpop.permute.xlu0 %761
        %763 = vrot.lane.b32.xlu0 %v740, 96
        %v764 = vpop.permute.xlu0 %763
        %765 = vrot.lane.b32.xlu0 %v741, 96
        %v766 = vpop.permute.xlu0 %765
        %767 = vrot.lane.b32.xlu0 %v742, 96
        %v768 = vpop.permute.xlu0 %767
        %769 = vrot.lane.b32.xlu0 %v743, 96
        %v770 = vpop.permute.xlu0 %769
        %771 = vrot.lane.b32.xlu0 %v744, 96
        %v772 = vpop.permute.xlu0 %771
        %773 = vrot.lane.b32.xlu0 %v745, 96
        %v774 = vpop.permute.xlu0 %773
        %775 = vrot.lane.b32.xlu0 %v746, 96
        %v776 = vpop.permute.xlu0 %775
        %777 = vrot.lane.b32.xlu0 %v747, 96
        %v778 = vpop.permute.xlu0 %777
        %779 = vrot.lane.b32.xlu0 %v748, 96
        %v780 = vpop.permute.xlu0 %779
        %v781 = vrot.slane %v750, 4
        %v782 = vrot.slane %v752, 4
        %v783 = vrot.slane %v754, 4
        %v784 = vrot.slane %v756, 4
        %v785 = vrot.slane %v758, 4
        %v786 = vrot.slane %v760, 4
        %v787 = vrot.slane %v762, 4
        %v788 = vrot.slane %v764, 4
        %v789 = vrot.slane %v766, 4
        %v790 = vrot.slane %v768, 4
        %v791 = vrot.slane %v770, 4
        %v792 = vrot.slane %v772, 4
        %v793 = vrot.slane %v774, 4
        %v794 = vrot.slane %v776, 4
        %v795 = vrot.slane %v778, 4
        %v796 = vrot.slane %v780, 4
        %vm797 = vcmask 785408
        %v798 = vsel %vm797, %v750, %v781
        %v799 = vsel %vm797, %v752, %v782
        %v800 = vsel %vm797, %v754, %v783
        %v801 = vsel %vm797, %v756, %v784
        %v802 = vsel %vm797, %v758, %v785
        %v803 = vsel %vm797, %v760, %v786
        %v804 = vsel %vm797, %v762, %v787
        %v805 = vsel %vm797, %v764, %v788
        %v806 = vsel %vm797, %v766, %v789
        %v807 = vsel %vm797, %v768, %v790
        %v808 = vsel %vm797, %v770, %v791
        %v809 = vsel %vm797, %v772, %v792
        %v810 = vsel %vm797, %v774, %v793
        %v811 = vsel %vm797, %v776, %v794
        %v812 = vsel %vm797, %v778, %v795
        %v813 = vsel %vm797, %v780, %v796
        %830 = vst [vmem:[%s287] sm:$0xf] %v798
        %831 = vst [vmem:[%s287 + $0x4] sm:$0xf] %v799
        %832 = vst [vmem:[%s287 + $0x8] sm:$0xf] %v800
        %833 = vst [vmem:[%s287 + $0xc] sm:$0xf] %v801
        %834 = vst [vmem:[%s287 + $0x10] sm:$0xf] %v802
        %835 = vst [vmem:[%s287 + $0x14] sm:$0xf] %v803
        %836 = vst [vmem:[%s287 + $0x18] sm:$0xf] %v804
        %837 = vst [vmem:[%s287 + $0x1c] sm:$0xf] %v805
        %838 = vst [vmem:[%s287 + $0x20] sm:$0xf] %v806
        %839 = vst [vmem:[%s287 + $0x24] sm:$0xf] %v807
        %840 = vst [vmem:[%s287 + $0x28] sm:$0xf] %v808
        %841 = vst [vmem:[%s287 + $0x2c] sm:$0xf] %v809
        %842 = vst [vmem:[%s287 + $0x30] sm:$0xf] %v810
        %843 = vst [vmem:[%s287 + $0x34] sm:$0xf] %v811
        %844 = vst [vmem:[%s287 + $0x38] sm:$0xf] %v812
        %845 = vst [vmem:[%s287 + $0x3c] sm:$0xf] %v813
        %s846 = smul.u32 16, %s28
        %p847 = scmp.lt.s32.totalorder %s27, 1
        %s848 = scalar_select %p847, %s27, 1
        %p849 = scmp.lt.s32.totalorder %s846, 31
        %s850 = scalar_select %p849, %s846, 31
        %s851 = smul.addr %s848, 32
        %s852 = sadd.s32 %s850, %s851
        %s853 = smul.addr %s852, 4
        %s854 = scalar_lea.vmem %s3, %s853
        %s855 = smul.u32 16, %s28
        %p856 = scmp.lt.s32.totalorder %s27, 1
        %s857 = scalar_select %p856, %s27, 1
        %p858 = scmp.lt.s32.totalorder %s855, 31
        %s859 = scalar_select %p858, %s855, 31
        %s860 = smul.addr %s857, 32
        %s861 = sadd.s32 %s859, %s860
        %s862 = smul.addr %s861, 4
        %s863 = scalar_lea.vmem %s4, %s862
        %s864 = sand.u32 %s171, 1
        %s865 = scalar_lea.sflag [#allocation4], %s864
        %s866 = sand.u32 %s171, 1
        %s867 = smul.addr %s866, 64
        %s868 = scalar_lea.vmem [#allocation5], %s867
        // Predicated region
        $region37: #{tpu_custom_call.1} parent=31 // pred_check
          %p869 = pneg %p125
        $region38: #{tpu_custom_call.1} parent=31 // pred_check_branch
          %871 = sbr.rel (%p869) target = $region40
        $region39: #{tpu_custom_call.1} parent=31 // pred_region
          %s872 = smul.u32 16, %s28
        $region40: #{tpu_custom_call.1} parent=31 // pred_fallthru
          _
        // Predicated region
        $region41: #{tpu_custom_call.1} parent=31 // pred_check
          %p873 = pneg %p153
        $region42: #{tpu_custom_call.1} parent=31 // pred_check_branch
          %875 = sbr.rel (%p873) target = $region44
        $region43: #{tpu_custom_call.1} parent=31 // pred_region
          %s876 = smul.u32 16, %s28
        $region44: #{tpu_custom_call.1} parent=31 // pred_fallthru
          _
        // Predicated region
        $region45: #{tpu_custom_call.1} parent=31 // pred_check
          %p877 = pneg %p181
        $region46: #{tpu_custom_call.1} parent=31 // pred_check_branch
          %879 = sbr.rel (%p877) target = $region48
        $region47: #{tpu_custom_call.1} parent=31 // pred_region
          %s880 = smul.u32 16, %s28
          %s882 = ssub.s32 1024, 1024
          %883 = vsyncadd %s865, %s882
          %s884 = smul.addr %s27, 32
          %s885 = sadd.s32 %s880, %s884
          %s886 = smul.addr %s885, 64
          %s887 = scalar_lea.hbm %s5, %s886
          %s888 = sshll.u32 %s868, 4
          %s889 = int_to_ptr.vmem [resolvable:$true] %s888
          %894 = dma.vmem_to_hbm [thread:$0]  %s889, 1024, %s887, %s865, 64, 64, 4
        $region48: #{tpu_custom_call.1} parent=31 // pred_fallthru
          _
      $region32: #{tpu_custom_call.1} parent=5 // pred_fallthru
        _
      %p895 = scmp.le.s32.totalorder 2, %s18
      // Predicated region
      $region49: #{tpu_custom_call.1} parent=5 // pred_check
        %p896 = pneg %p895
      $region50: #{tpu_custom_call.1} parent=5 // pred_check_branch
        %898 = sbr.rel (%p896) target = $region52
      $region51: #{tpu_custom_call.1} parent=5 // pred_region
        %s899 = ssub.s32 %s18, 2
        // Predicated region
        $region53: #{tpu_custom_call.1} parent=51 // pred_check
          %p900 = pneg %p131
        $region54: #{tpu_custom_call.1} parent=51 // pred_check_branch
          %902 = sbr.rel (%p900) target = $region56
        $region55: #{tpu_custom_call.1} parent=51 // pred_region
          %s903 = smul.u32 16, %s30
          %p904 = scmp.lt.s32.totalorder %s29, 1
          %s905 = scalar_select %p904, %s29, 1
          %p906 = scmp.lt.s32.totalorder %s903, 31
          %s907 = scalar_select %p906, %s903, 31
          %s908 = smul.addr %s905, 32
          %s909 = sadd.s32 %s907, %s908
          %s910 = smul.addr %s909, 4
          %s911 = scalar_lea.vmem %s3, %s910
        $region56: #{tpu_custom_call.1} parent=51 // pred_fallthru
          _
        // Predicated region
        $region57: #{tpu_custom_call.1} parent=51 // pred_check
          %p912 = pneg %p159
        $region58: #{tpu_custom_call.1} parent=51 // pred_check_branch
          %914 = sbr.rel (%p912) target = $region60
        $region59: #{tpu_custom_call.1} parent=51 // pred_region
          %s915 = smul.u32 16, %s30
          %p916 = scmp.lt.s32.totalorder %s29, 1
          %s917 = scalar_select %p916, %s29, 1
          %p918 = scmp.lt.s32.totalorder %s915, 31
          %s919 = scalar_select %p918, %s915, 31
          %s920 = smul.addr %s917, 32
          %s921 = sadd.s32 %s919, %s920
          %s922 = smul.addr %s921, 4
          %s923 = scalar_lea.vmem %s4, %s922
        $region60: #{tpu_custom_call.1} parent=51 // pred_fallthru
          _
        // Predicated region
        $region61: #{tpu_custom_call.1} parent=51 // pred_check
          %p924 = pneg %p187
        $region62: #{tpu_custom_call.1} parent=51 // pred_check_branch
          %926 = sbr.rel (%p924) target = $region64
        $region63: #{tpu_custom_call.1} parent=51 // pred_region
          %s927 = sand.u32 %s172, 1
          %s928 = scalar_lea.sflag [#allocation4], %s927
          %s929 = sand.u32 %s172, 1
          %s930 = smul.addr %s929, 64
          %s931 = scalar_lea.vmem [#allocation5], %s930
          %932 = dma.done %s928, 1024
        $region64: #{tpu_custom_call.1} parent=51 // pred_fallthru
          _
      $region52: #{tpu_custom_call.1} parent=5 // pred_fallthru
        _
    $region6: #{tpu_custom_call.1} parent=1 // loop_footer
      %s22 = sadd.s32 1, %s18
    $region7: #{tpu_custom_call.1} parent=1 // loop_footer_branch
      %17 = sbr.rel target = $region3
    $region8: #{tpu_custom_call.1} parent=1 // loop_exit
      _
    %933 = vsyncpa [#allocation3], 1
    %s934 = scalar_lea.sflag [#allocation3], 1
    %935 = vsyncpa %s934, 1
    %936 = vsyncpa [#allocation4], 1
    %s937 = scalar_lea.sflag [#allocation4], 1
    %938 = vsyncpa %s937, 1

</llo_original>
